<compile_context>
chip_gen: v6e
topology: v6e:2x2x1
jax: 0.10.0
libtpu: 0.0.40
codegen_flags: <defaults>
</compile_context>

<pallas_src>
import functools

import jax
import jax.numpy as jnp
from jax.experimental import pallas as pl
from jax.experimental.pallas import tpu as pltpu


def attention_kernel(x_ref, gamma_ref, beta_ref, wqkv_ref, wout_ref, bout_ref,
                     o_ref, qkv_ref, oh_ref, *, heads, dim_head, eps, mm_dtype):
    inner = heads * dim_head

    # ---- LayerNorm (f32, biased variance like nn.LayerNorm) ----
    x = x_ref[0].astype(jnp.float32)                                # (N, D)
    mean = jnp.mean(x, axis=-1, keepdims=True)
    var = jnp.mean((x - mean) ** 2, axis=-1, keepdims=True)
    xn = (x - mean) * jax.lax.rsqrt(var + eps)
    xn = xn * gamma_ref[0].astype(jnp.float32) + beta_ref[0].astype(jnp.float32)

    # ---- QKV projection: ONE wide matmul across all heads (full MXU lanes).
    # The 1/sqrt(dh) softmax scale is pre-folded into the Q weight columns.
    qkv_ref[...] = jnp.dot(xn.astype(mm_dtype), wqkv_ref[...],
                           preferred_element_type=jnp.float32)      # (N, 3*inner)

    approx_rcp = mm_dtype != jnp.float32

    # ---- per-head attention (static unroll; static column slices are free) ----
    for h in range(heads):
        lo = h * dim_head
        hi = lo + dim_head
        q = qkv_ref[:, lo:hi].astype(mm_dtype)                       # (N, dh)
        k = qkv_ref[:, inner + lo:inner + hi].astype(mm_dtype)       # (N, dh)
        v = qkv_ref[:, 2 * inner + lo:2 * inner + hi].astype(mm_dtype)

        # q @ k^T via dot_general contracting the last dims (no materialized T).
        dots = jax.lax.dot_general(
            q, k, dimension_numbers=(((1,), (1,)), ((), ())),
            preferred_element_type=jnp.float32)                      # (N, N)

        # stable softmax with deferred normalization
        m = jnp.max(dots, axis=-1, keepdims=True)
        p = jnp.exp(dots - m)                                        # unnormalized
        l = jnp.sum(p, axis=-1, keepdims=True)                       # (N, 1)

        o_h = jnp.dot(p.astype(mm_dtype), v,
                      preferred_element_type=jnp.float32)            # (N, dh)
        o_h = o_h * pl.reciprocal(l, approx=approx_rcp)              # (N,dh), not (N,N)
        # dropout(p=0.0) is the identity
        oh_ref[:, lo:hi] = o_h

    # ---- output projection: single full-depth contraction over inner ----
    out = jnp.dot(oh_ref[...].astype(mm_dtype), wout_ref[...],
                  preferred_element_type=jnp.float32)                # (N, D_pad)
    o_ref[0] = (out + bout_ref[0].astype(jnp.float32)).astype(o_ref.dtype)


def attention_forward(x, params, *, heads, dim_head, mm_dtype=jnp.bfloat16):
    B, N, D = x.shape
    inner = heads * dim_head
    scale = float(dim_head) ** -0.5
    project_out = not (heads == 1 and dim_head == D)

    # lane-dense output padding (perf lever for sub-128 model dims)
    D_pad = D if D % 128 == 0 else ((D + 127) // 128) * 128

    # ---- host-side weight prep ----
    w_qkv = params["w_qkv"].astype(jnp.float32)                      # (D, 3*inner)
    w_qkv = w_qkv.at[:, :inner].multiply(scale)                      # fold scale into Q
    w_qkv = w_qkv.astype(mm_dtype)

    if project_out:
        w_out = params["w_out"].astype(jnp.float32)                  # (inner, D)
        b_out = params["b_out"].astype(jnp.float32)                  # (D,)
    else:
        # to_out == nn.Identity(): equivalent identity projection.
        w_out = jnp.eye(inner, D, dtype=jnp.float32)
        b_out = jnp.zeros((D,), jnp.float32)

    if D_pad != D:
        w_out = jnp.pad(w_out, ((0, 0), (0, D_pad - D)))
        b_out = jnp.pad(b_out, ((0, D_pad - D),))
    w_out = w_out.astype(mm_dtype)
    b_out = b_out.reshape(1, D_pad)
    gamma = params["gamma"].astype(jnp.float32).reshape(1, D)
    beta = params["beta"].astype(jnp.float32).reshape(1, D)

    kernel = functools.partial(attention_kernel, heads=heads, dim_head=dim_head,
                               eps=1e-5, mm_dtype=mm_dtype)

    # ---- advisory cost estimate for the XLA scheduler ----
    mm_bytes = jnp.dtype(mm_dtype).itemsize
    flops = (2 * B * N * D * 3 * inner               # qkv projection
             + 4 * B * heads * N * N * dim_head      # q@k^T and p@v
             + 2 * B * N * inner * D_pad)            # output projection
    transcendentals = B * heads * N * N              # exp
    bytes_accessed = (2 * B * N * D * x.dtype.itemsize
                      + (w_qkv.size + w_out.size) * mm_bytes
                      + (b_out.size + gamma.size + beta.size) * 4)

    # ---- generation-aware VMEM budget (<= 80% of physical, no 32 MiB floor) ----
    try:
        vmem_cap = int(pltpu.get_tpu_info().vmem_capacity_bytes)
    except Exception:
        vmem_cap = 64 * 1024 * 1024                  # conservative (v7x per-TC)
    vmem_estimate = (
        2 * N * D * x.dtype.itemsize                 # x block (double buffered)
        + 2 * N * D_pad * x.dtype.itemsize           # out block (double buffered)
        + 2 * (w_qkv.size + w_out.size) * mm_bytes   # resident weights (+buffer)
        + 4 * (N * 3 * inner + N * inner)            # f32 scratches
        + 4 * (N * N + 3 * N * dim_head + 2 * N * D))  # live-tile headroom
    vmem_limit = int(min(max(3 * vmem_estimate, 4 * 1024 * 1024),
                         (vmem_cap * 4) // 5))

    out = pl.pallas_call(
        kernel,
        out_shape=jax.ShapeDtypeStruct((B, N, D_pad), x.dtype),
        grid_spec=pltpu.PrefetchScalarGridSpec(
            num_scalar_prefetch=0,
            grid=(B,),
            in_specs=[
                pl.BlockSpec((1, N, D), lambda b: (b, 0, 0)),        # x
                pl.BlockSpec((1, D), lambda b: (0, 0)),              # gamma
                pl.BlockSpec((1, D), lambda b: (0, 0)),              # beta
                pl.BlockSpec((D, 3 * inner), lambda b: (0, 0)),      # W_qkv (resident)
                pl.BlockSpec((inner, D_pad), lambda b: (0, 0)),      # W_out (resident)
                pl.BlockSpec((1, D_pad), lambda b: (0, 0)),          # b_out
            ],
            out_specs=pl.BlockSpec((1, N, D_pad), lambda b: (b, 0, 0)),
            scratch_shapes=[
                pltpu.VMEM((N, 3 * inner), jnp.float32),             # qkv
                pltpu.VMEM((N, inner), jnp.float32),                 # per-head outputs
            ],
        ),
        compiler_params=pltpu.CompilerParams(
            dimension_semantics=("parallel",),
            vmem_limit_bytes=vmem_limit,
        ),
        cost_estimate=pl.CostEstimate(
            flops=flops,
            transcendentals=transcendentals,
            bytes_accessed=bytes_accessed,
        ),
    )(x, gamma, beta, w_qkv, w_out, b_out)

    return out[..., :D] if D_pad != D else out


def attention_reference(x, params, *, heads, dim_head):
    """Pure-JAX reference of the torch forward pass."""
    B, N, D = x.shape
    inner = heads * dim_head
    mean = jnp.mean(x, axis=-1, keepdims=True)
    var = jnp.mean((x - mean) ** 2, axis=-1, keepdims=True)
    xn = (x - mean) * jax.lax.rsqrt(var + 1e-5)
    xn = xn * params["gamma"] + params["beta"]
    qkv = xn @ params["w_qkv"]                                       # (B, N, 3*inner)
    q, k, v = jnp.split(qkv, 3, axis=-1)

    def to_heads(t):
        return jnp.transpose(t.reshape(B, N, heads, dim_head), (0, 2, 1, 3))

    q, k, v = map(to_heads, (q, k, v))                               # (B, H, N, dh)
    dots = jnp.einsum("bhnd,bhmd->bhnm", q, k) * (dim_head ** -0.5)
    attn = jax.nn.softmax(dots, axis=-1)
    out = jnp.einsum("bhnm,bhmd->bhnd", attn, v)
    out = jnp.transpose(out, (0, 2, 1, 3)).reshape(B, N, inner)
    if heads == 1 and dim_head == D:
        return out
    return out @ params["w_out"] + params["b_out"]


if __name__ == "__main__":
    B, N, D = 2, 8, 32
    heads, dim_head = 2, 16
    inner = heads * dim_head

    key = jax.random.PRNGKey(0)
    kx, kqkv, kwo, kbo = jax.random.split(key, 4)

    x = jax.random.normal(kx, (B, N, D), dtype=jnp.float32)
    params = {
        "gamma": jnp.ones((D,), jnp.float32),                        # nn.LayerNorm default init
        "beta": jnp.zeros((D,), jnp.float32),
        "w_qkv": jax.random.normal(kqkv, (D, 3 * inner), jnp.float32) * 0.05,
        "w_out": jax.random.normal(kwo, (inner, D), jnp.float32) * 0.05,
        "b_out": jax.random.normal(kbo, (D,), jnp.float32) * 0.05,
    }

    ref = attention_reference(x, params, heads=heads, dim_head=dim_head)

    # f32 MXU operands: tight check against the pure-JAX reference.
    out_f32 = attention_forward(x, params, heads=heads, dim_head=dim_head,
                                mm_dtype=jnp.float32)
    out_f32 = jax.block_until_ready(out_f32)
    assert out_f32.shape == (B, N, D)
    assert jnp.allclose(out_f32, ref, atol=1e-4, rtol=1e-4)

    # Default bf16 MXU operands (v6e/v7x fast path): bf16-appropriate tolerance.
    out_bf16 = attention_forward(x, params, heads=heads, dim_head=dim_head)
    out_bf16 = jax.block_until_ready(out_bf16)
    assert out_bf16.shape == (B, N, D)
    assert jnp.allclose(out_bf16, ref, atol=2e-2, rtol=2e-2)

    print("KERNEL_OK")
</pallas_src>

<mosaic_0001>
module attributes {stable_mosaic.version = 11 : i64} {
  func.func @attention_kernel(%arg0: i32, %arg1: memref<1x8x32xf32, #tpu.memory_space<vmem>>, %arg2: memref<1x32xf32, #tpu.memory_space<vmem>>, %arg3: memref<1x32xf32, #tpu.memory_space<vmem>>, %arg4: memref<32x96xf32, #tpu.memory_space<vmem>>, %arg5: memref<32x128xf32, #tpu.memory_space<vmem>>, %arg6: memref<1x128xf32, #tpu.memory_space<vmem>>, %arg7: memref<1x8x128xf32, #tpu.memory_space<vmem>>, %arg8: memref<8x96xf32, #tpu.memory_space<vmem>>, %arg9: memref<8x32xf32, #tpu.memory_space<vmem>>) attributes {dimension_semantics = [#tpu.dimension_semantics<parallel>], iteration_bounds = array<i64: 2>, scalar_prefetch = 0 : i64, scratch_operands = 2 : i64, tpu.core_type = #tpu.core_type<tc>, window_params = [{transform_indices = @transform_0, window_bounds = array<i64: 1, 8, 32>}, {pipeline_mode = #tpu.pipeline_mode<synchronous>, transform_indices = @transform_1, window_bounds = array<i64: 1, 32>}, {pipeline_mode = #tpu.pipeline_mode<synchronous>, transform_indices = @transform_2, window_bounds = array<i64: 1, 32>}, {pipeline_mode = #tpu.pipeline_mode<synchronous>, transform_indices = @transform_3, window_bounds = array<i64: 32, 96>}, {pipeline_mode = #tpu.pipeline_mode<synchronous>, transform_indices = @transform_4, window_bounds = array<i64: 32, 128>}, {pipeline_mode = #tpu.pipeline_mode<synchronous>, transform_indices = @transform_5, window_bounds = array<i64: 1, 128>}, {transform_indices = @transform_6, window_bounds = array<i64: 1, 8, 128>}]} {
    %c0 = arith.constant 0 : index
    %c0_0 = arith.constant 0 : index
    %c0_1 = arith.constant 0 : index
    %0 = vector.load %arg1[%c0, %c0_0, %c0_1] : memref<1x8x32xf32, #tpu.memory_space<vmem>>, vector<1x8x32xf32>
    %1 = vector.shape_cast %0 : vector<1x8x32xf32> to vector<8x32xf32>
    %cst = arith.constant dense<0.000000e+00> : vector<8xf32>
    %2 = vector.multi_reduction <add>, %1, %cst [1] : vector<8x32xf32> to vector<8xf32>
    %3 = vector.shape_cast %2 : vector<8xf32> to vector<8x1xf32>
    %cst_2 = arith.constant 3.200000e+01 : f32
    %4 = vector.broadcast %cst_2 : f32 to vector<8x1xf32>
    %5 = arith.divf %3, %4 : vector<8x1xf32>
    %6 = vector.broadcast %5 : vector<8x1xf32> to vector<8x32xf32>
    %7 = arith.subf %1, %6 : vector<8x32xf32>
    %8 = arith.mulf %7, %7 : vector<8x32xf32>
    %cst_3 = arith.constant dense<0.000000e+00> : vector<8xf32>
    %9 = vector.multi_reduction <add>, %8, %cst_3 [1] : vector<8x32xf32> to vector<8xf32>
    %10 = vector.shape_cast %9 : vector<8xf32> to vector<8x1xf32>
    %cst_4 = arith.constant 3.200000e+01 : f32
    %11 = vector.broadcast %cst_4 : f32 to vector<8x1xf32>
    %12 = arith.divf %10, %11 : vector<8x1xf32>
    %13 = vector.broadcast %5 : vector<8x1xf32> to vector<8x32xf32>
    %14 = arith.subf %1, %13 : vector<8x32xf32>
    %cst_5 = arith.constant 9.99999974E-6 : f32
    %15 = vector.broadcast %cst_5 : f32 to vector<8x1xf32>
    %16 = arith.addf %12, %15 : vector<8x1xf32>
    %17 = math.rsqrt %16 : vector<8x1xf32>
    %18 = vector.broadcast %17 : vector<8x1xf32> to vector<8x32xf32>
    %19 = arith.mulf %14, %18 : vector<8x32xf32>
    %c0_6 = arith.constant 0 : index
    %c0_7 = arith.constant 0 : index
    %20 = vector.load %arg2[%c0_6, %c0_7] : memref<1x32xf32, #tpu.memory_space<vmem>>, vector<1x32xf32>
    %21 = vector.shape_cast %20 : vector<1x32xf32> to vector<32xf32>
    %22 = vector.shape_cast %21 : vector<32xf32> to vector<1x32xf32>
    %23 = vector.broadcast %22 : vector<1x32xf32> to vector<8x32xf32>
    %24 = arith.mulf %19, %23 : vector<8x32xf32>
    %c0_8 = arith.constant 0 : index
    %c0_9 = arith.constant 0 : index
    %25 = vector.load %arg3[%c0_8, %c0_9] : memref<1x32xf32, #tpu.memory_space<vmem>>, vector<1x32xf32>
    %26 = vector.shape_cast %25 : vector<1x32xf32> to vector<32xf32>
    %27 = vector.shape_cast %26 : vector<32xf32> to vector<1x32xf32>
    %28 = vector.broadcast %27 : vector<1x32xf32> to vector<8x32xf32>
    %29 = arith.addf %24, %28 : vector<8x32xf32>
    %c0_10 = arith.constant 0 : index
    %c0_11 = arith.constant 0 : index
    %30 = vector.load %arg4[%c0_10, %c0_11] : memref<32x96xf32, #tpu.memory_space<vmem>>, vector<32x96xf32>
    %cst_12 = arith.constant dense<0.000000e+00> : vector<8x96xf32>
    %31 = tpu.matmul %29, %30, %cst_12 {dimension_numbers = #tpu.dot_dimension_numbers<[1], [0], [0], [1], [0, 0, 1, 1], [], []>} : vector<8x32xf32>, vector<32x96xf32>, vector<8x96xf32> -> vector<8x96xf32>
    %c0_13 = arith.constant 0 : index
    %c0_14 = arith.constant 0 : index
    %32 = vector.load %arg8[%c0_13, %c0_14] : memref<8x96xf32, #tpu.memory_space<vmem>>, vector<8x96xf32>
    tpu.vector_store %arg8[%c0_13, %c0_14], %31 {strides = array<i32>} : memref<8x96xf32, #tpu.memory_space<vmem>>, vector<8x96xf32>,
    %c0_15 = arith.constant 0 : index
    %c0_16 = arith.constant 0 : index
    %33 = vector.load %arg8[%c0_15, %c0_16] : memref<8x96xf32, #tpu.memory_space<vmem>>, vector<8x16xf32>
    %c0_17 = arith.constant 0 : index
    %c32 = arith.constant 32 : index
    %34 = vector.load %arg8[%c0_17, %c32] : memref<8x96xf32, #tpu.memory_space<vmem>>, vector<8x16xf32>
    %c0_18 = arith.constant 0 : index
    %c64 = arith.constant 64 : index
    %35 = vector.load %arg8[%c0_18, %c64] : memref<8x96xf32, #tpu.memory_space<vmem>>, vector<8x16xf32>
    %cst_19 = arith.constant dense<0.000000e+00> : vector<8x8xf32>
    %36 = tpu.matmul %33, %34, %cst_19 {dimension_numbers = #tpu.dot_dimension_numbers<[1], [1], [0], [0], [0, 0, 1, 0], [], []>} : vector<8x16xf32>, vector<8x16xf32>, vector<8x8xf32> -> vector<8x8xf32>
    %cst_20 = arith.constant dense<0xFF800000> : vector<8xf32>
    %37 = vector.multi_reduction <maximumf>, %36, %cst_20 [1] : vector<8x8xf32> to vector<8xf32>
    %38 = vector.shape_cast %37 : vector<8xf32> to vector<8x1xf32>
    %39 = vector.broadcast %38 : vector<8x1xf32> to vector<8x8xf32>
    %40 = arith.subf %36, %39 : vector<8x8xf32>
    %41 = math.exp %40 : vector<8x8xf32>
    %cst_21 = arith.constant dense<0.000000e+00> : vector<8xf32>
    %42 = vector.multi_reduction <add>, %41, %cst_21 [1] : vector<8x8xf32> to vector<8xf32>
    %43 = vector.shape_cast %42 : vector<8xf32> to vector<8x1xf32>
    %cst_22 = arith.constant dense<0.000000e+00> : vector<8x16xf32>
    %44 = tpu.matmul %41, %35, %cst_22 {dimension_numbers = #tpu.dot_dimension_numbers<[1], [0], [0], [1], [0, 0, 1, 1], [], []>} : vector<8x8xf32>, vector<8x16xf32>, vector<8x16xf32> -> vector<8x16xf32>
    %45 = tpu.reciprocal %43 : vector<8x1xf32> -> vector<8x1xf32>
    %46 = vector.broadcast %45 : vector<8x1xf32> to vector<8x16xf32>
    %47 = arith.mulf %44, %46 : vector<8x16xf32>
    %c0_23 = arith.constant 0 : index
    %c0_24 = arith.constant 0 : index
    %48 = vector.load %arg9[%c0_23, %c0_24] : memref<8x32xf32, #tpu.memory_space<vmem>>, vector<8x16xf32>
    tpu.vector_store %arg9[%c0_23, %c0_24], %47 {strides = array<i32>} : memref<8x32xf32, #tpu.memory_space<vmem>>, vector<8x16xf32>,
    %c0_25 = arith.constant 0 : index
    %c16 = arith.constant 16 : index
    %49 = vector.load %arg8[%c0_25, %c16] : memref<8x96xf32, #tpu.memory_space<vmem>>, vector<8x16xf32>
    %c0_26 = arith.constant 0 : index
    %c48 = arith.constant 48 : index
    %50 = vector.load %arg8[%c0_26, %c48] : memref<8x96xf32, #tpu.memory_space<vmem>>, vector<8x16xf32>
    %c0_27 = arith.constant 0 : index
    %c80 = arith.constant 80 : index
    %51 = vector.load %arg8[%c0_27, %c80] : memref<8x96xf32, #tpu.memory_space<vmem>>, vector<8x16xf32>
    %cst_28 = arith.constant dense<0.000000e+00> : vector<8x8xf32>
    %52 = tpu.matmul %49, %50, %cst_28 {dimension_numbers = #tpu.dot_dimension_numbers<[1], [1], [0], [0], [0, 0, 1, 0], [], []>} : vector<8x16xf32>, vector<8x16xf32>, vector<8x8xf32> -> vector<8x8xf32>
    %cst_29 = arith.constant dense<0xFF800000> : vector<8xf32>
    %53 = vector.multi_reduction <maximumf>, %52, %cst_29 [1] : vector<8x8xf32> to vector<8xf32>
    %54 = vector.shape_cast %53 : vector<8xf32> to vector<8x1xf32>
    %55 = vector.broadcast %54 : vector<8x1xf32> to vector<8x8xf32>
    %56 = arith.subf %52, %55 : vector<8x8xf32>
    %57 = math.exp %56 : vector<8x8xf32>
    %cst_30 = arith.constant dense<0.000000e+00> : vector<8xf32>
    %58 = vector.multi_reduction <add>, %57, %cst_30 [1] : vector<8x8xf32> to vector<8xf32>
    %59 = vector.shape_cast %58 : vector<8xf32> to vector<8x1xf32>
    %cst_31 = arith.constant dense<0.000000e+00> : vector<8x16xf32>
    %60 = tpu.matmul %57, %51, %cst_31 {dimension_numbers = #tpu.dot_dimension_numbers<[1], [0], [0], [1], [0, 0, 1, 1], [], []>} : vector<8x8xf32>, vector<8x16xf32>, vector<8x16xf32> -> vector<8x16xf32>
    %61 = tpu.reciprocal %59 : vector<8x1xf32> -> vector<8x1xf32>
    %62 = vector.broadcast %61 : vector<8x1xf32> to vector<8x16xf32>
    %63 = arith.mulf %60, %62 : vector<8x16xf32>
    %c0_32 = arith.constant 0 : index
    %c16_33 = arith.constant 16 : index
    %64 = vector.load %arg9[%c0_32, %c16_33] : memref<8x32xf32, #tpu.memory_space<vmem>>, vector<8x16xf32>
    tpu.vector_store %arg9[%c0_32, %c16_33], %63 {strides = array<i32>} : memref<8x32xf32, #tpu.memory_space<vmem>>, vector<8x16xf32>,
    %c0_34 = arith.constant 0 : index
    %c0_35 = arith.constant 0 : index
    %65 = vector.load %arg9[%c0_34, %c0_35] : memref<8x32xf32, #tpu.memory_space<vmem>>, vector<8x32xf32>
    %c0_36 = arith.constant 0 : index
    %c0_37 = arith.constant 0 : index
    %66 = vector.load %arg5[%c0_36, %c0_37] : memref<32x128xf32, #tpu.memory_space<vmem>>, vector<32x128xf32>
    %cst_38 = arith.constant dense<0.000000e+00> : vector<8x128xf32>
    %67 = tpu.matmul %65, %66, %cst_38 {dimension_numbers = #tpu.dot_dimension_numbers<[1], [0], [0], [1], [0, 0, 1, 1], [], []>} : vector<8x32xf32>, vector<32x128xf32>, vector<8x128xf32> -> vector<8x128xf32>
    %c0_39 = arith.constant 0 : index
    %c0_40 = arith.constant 0 : index
    %68 = vector.load %arg6[%c0_39, %c0_40] : memref<1x128xf32, #tpu.memory_space<vmem>>, vector<1x128xf32>
    %69 = vector.shape_cast %68 : vector<1x128xf32> to vector<128xf32>
    %70 = vector.shape_cast %69 : vector<128xf32> to vector<1x128xf32>
    %71 = vector.broadcast %70 : vector<1x128xf32> to vector<8x128xf32>
    %72 = arith.addf %67, %71 : vector<8x128xf32>
    %c0_41 = arith.constant 0 : index
    %c0_42 = arith.constant 0 : index
    %c0_43 = arith.constant 0 : index
    %73 = vector.load %arg7[%c0_41, %c0_42, %c0_43] : memref<1x8x128xf32, #tpu.memory_space<vmem>>, vector<1x8x128xf32>
    %74 = vector.shape_cast %73 : vector<1x8x128xf32> to vector<8x128xf32>
    %75 = vector.shape_cast %72 : vector<8x128xf32> to vector<1x8x128xf32>
    tpu.vector_store %arg7[%c0_41, %c0_42, %c0_43], %75 {strides = array<i32>} : memref<1x8x128xf32, #tpu.memory_space<vmem>>, vector<1x8x128xf32>,
    return
  }
  func.func @transform_0(%arg0: i32) -> (i32, i32, i32) {
    %c0_i32 = arith.constant 0 : i32
    %c0_i32_0 = arith.constant 0 : i32
    %c0_i32_1 = arith.constant 0 : i32
    return %arg0, %c0_i32, %c0_i32_0 : i32, i32, i32
  }
  func.func @transform_1(%arg0: i32) -> (i32, i32) {
    %c0_i32 = arith.constant 0 : i32
    %c0_i32_0 = arith.constant 0 : i32
    %c0_i32_1 = arith.constant 0 : i32
    return %c0_i32, %c0_i32_0 : i32, i32
  }
  func.func @transform_2(%arg0: i32) -> (i32, i32) {
    %c0_i32 = arith.constant 0 : i32
    %c0_i32_0 = arith.constant 0 : i32
    %c0_i32_1 = arith.constant 0 : i32
    return %c0_i32, %c0_i32_0 : i32, i32
  }
  func.func @transform_3(%arg0: i32) -> (i32, i32) {
    %c0_i32 = arith.constant 0 : i32
    %c0_i32_0 = arith.constant 0 : i32
    %c0_i32_1 = arith.constant 0 : i32
    return %c0_i32, %c0_i32_0 : i32, i32
  }
  func.func @transform_4(%arg0: i32) -> (i32, i32) {
    %c0_i32 = arith.constant 0 : i32
    %c0_i32_0 = arith.constant 0 : i32
    %c0_i32_1 = arith.constant 0 : i32
    return %c0_i32, %c0_i32_0 : i32, i32
  }
  func.func @transform_5(%arg0: i32) -> (i32, i32) {
    %c0_i32 = arith.constant 0 : i32
    %c0_i32_0 = arith.constant 0 : i32
    %c0_i32_1 = arith.constant 0 : i32
    return %c0_i32, %c0_i32_0 : i32, i32
  }
  func.func @transform_6(%arg0: i32) -> (i32, i32, i32) {
    %c0_i32 = arith.constant 0 : i32
    %c0_i32_0 = arith.constant 0 : i32
    %c0_i32_1 = arith.constant 0 : i32
    return %arg0, %c0_i32, %c0_i32_0 : i32, i32, i32
  }
}

</mosaic_0001>

<llo_original>
// kernel: tpu_custom_call.1
$region0: #{tpu_custom_call.1}
  #allocation0 [shape = 'u32[]', space=smem, size = 0x4, offset = 0x4, fixed_abs, tag = 'smem constant byte address 0x4 - core index']
  #allocation1 [shape = 'u32[144,128]{1,0:T(1,128)}', space=vmem, size = 0x12000, scoped, tag = 'internal scratch']
  #allocation2 [shape = 'f32[8,96]{1,0:T(8,128)}', space=vmem, size = 0x1000, scoped, tag = 'scratch operand']
  #allocation3 [shape = 'f32[8,32]{1,0:T(8,128)}', space=vmem, size = 0x1000, scoped, tag = 'scratch operand']
  %s0 = inlined_call_operand.hbm [shape: f32[2,8,32], index: 0, kind: input, shape index: {}]
  %s1 = inlined_call_operand.vmem [shape: f32[1,32], index: 1, kind: input, shape index: {}]
  %s2 = inlined_call_operand.vmem [shape: f32[1,32], index: 2, kind: input, shape index: {}]
  %s3 = inlined_call_operand.hbm [shape: f32[32,96], index: 3, kind: input, shape index: {}]
  %s4 = inlined_call_operand.hbm [shape: f32[32,128], index: 4, kind: input, shape index: {}]
  %s5 = inlined_call_operand.vmem [shape: f32[1,128], index: 5, kind: input, shape index: {}]
  %s6 = inlined_call_operand.hbm [shape: f32[2,8,128], index: 6, kind: output, shape index: {}]
  %s7 = sld [smem:[#allocation0]]
  $region69: #{tpu_custom_call.1} parent=0
    _
  %s9 = ssub.s32 1, %s7
  %s10 = scalar_select 0, %s9, %s7
  $region1: #{tpu_custom_call.1} parent=0
    #allocation4 [shape = 'u8[8192]{0}', space=vmem, size = 0x2000, scoped, tag = 'input window, operand 0']
    #allocation5 [shape = 's32[2]{0}', space=sflag, size = 0x8, scoped, tag = 'scoped memory for tpu_custom_call.1']
    #allocation6 [shape = 's32[2]{0}', space=sflag, size = 0x8, scoped, tag = 'scoped memory for tpu_custom_call.1']
    #allocation7 [shape = 'u8[16384]{0}', space=vmem, size = 0x4000, scoped, tag = 'input window, operand 3, single buffered']
    #allocation8 [shape = 's32[1]{0}', space=sflag, size = 0x4, scoped, tag = 'scoped memory for tpu_custom_call.1']
    #allocation9 [shape = 'u8[16384]{0}', space=vmem, size = 0x4000, scoped, tag = 'input window, operand 4, single buffered']
    #allocation10 [shape = 'u8[8192]{0}', space=vmem, size = 0x2000, scoped, tag = 'output window, operand 0']
    %11 = vsyncpa [#allocation5], 0
    %s12 = scalar_lea.sflag [#allocation5], 1
    %13 = vsyncpa %s12, 0
    %14 = vsyncpa [#allocation8], 0
    %15 = vsyncpa [#allocation6], 0
    %s16 = scalar_lea.sflag [#allocation6], 1
    %17 = vsyncpa %s16, 0
    loop: start=0, step=1, limit=4
    $region2: #{tpu_custom_call.1} parent=1 // loop_pre_header
      _
    $region3: #{tpu_custom_call.1} parent=1 // loop_header
      %s19 = sphi 0, %s23
      %p20 = scmp.ge.s32.totalorder %s19, 4
      %s29 = sphi 0, %s31
      %s32 = sphi 0, %s29
      %s33 = sphi 0, %s32
      %s49 = sphi 0, %s33
      %s53 = sphi 0, %s53
      %s55 = sphi 0, %s53
      %s56 = sphi 0, %s55
      %s70 = sphi 0, %s56
      %s74 = sphi 0, %s74
      %s76 = sphi 0, %s74
      %s77 = sphi 0, %s76
      %s91 = sphi 0, %s77
      %s95 = sphi 0, %s95
      %s97 = sphi 0, %s95
      %s98 = sphi 0, %s97
      %s112 = sphi 0, %s98
      %s116 = sphi 0, %s116
      %s118 = sphi 0, %s116
      %s119 = sphi 0, %s118
      %s133 = sphi 0, %s119
      %s137 = sphi 0, %s137
      %s139 = sphi 0, %s137
      %s140 = sphi 0, %s139
      %s154 = sphi 0, %s140
      %s160 = sphi 0, %s162
      %s163 = sphi 0, %s160
      %s164 = sphi 0, %s163
      %s180 = sphi 0, %s164
    $region4: #{tpu_custom_call.1} parent=1 // loop_header_branch
      %22 = sbr.rel (%p20) target = $region8
    $region5: #{tpu_custom_call.1} parent=1 // loop_body
      %s24 = ssub.s32 %s19, 1
      %s25 = ssub.s32 %s19, 2
      %s26 = sadd.s32 %s19, 1
      %s27 = ssub.s32 %s19, %s26
      %p28 = scmp.eq.s32.totalorder %s27, 0
      %s30 = sadd.s32 %s29, 1
      %s31 = scalar_select %p28, %s29, %s30
      %p34 = pneg %p28
      %p35 = scmp.eq.s32.totalorder %s19, 1
      %p36 = por %p34, %p35
      %p37 = scmp.ne.s32.totalorder %s29, %s32
      %p38 = scmp.eq.s32.totalorder %s19, 0
      %p39 = por %p37, %p38
      %p40 = scmp.ne.s32.totalorder %s29, %s32
      %p41 = scmp.eq.s32.totalorder %s24, 1
      %p42 = por %p40, %p41
      %p43 = scmp.ne.s32.totalorder %s32, %s33
      %p44 = scmp.eq.s32.totalorder %s24, 0
      %p45 = por %p43, %p44
      %p46 = scmp.ne.s32.totalorder %s32, %s33
      %p47 = scmp.eq.s32.totalorder %s25, 1
      %p48 = por %p46, %p47
      %p50 = scmp.ne.s32.totalorder %s33, %s49
      %p51 = scmp.eq.s32.totalorder %s25, 0
      %p52 = por %p50, %p51
      %s54 = sadd.s32 %s53, 1
      %p57 = scmp.eq.s32.totalorder %s19, 1
      %p58 = scmp.ne.s32.totalorder %s53, %s55
      %p59 = scmp.eq.s32.totalorder %s19, 0
      %p60 = por %p58, %p59
      %p61 = scmp.ne.s32.totalorder %s53, %s55
      %p62 = scmp.eq.s32.totalorder %s24, 1
      %p63 = por %p61, %p62
      %p64 = scmp.ne.s32.totalorder %s55, %s56
      %p65 = scmp.eq.s32.totalorder %s24, 0
      %p66 = por %p64, %p65
      %p67 = scmp.ne.s32.totalorder %s55, %s56
      %p68 = scmp.eq.s32.totalorder %s25, 1
      %p69 = por %p67, %p68
      %p71 = scmp.ne.s32.totalorder %s56, %s70
      %p72 = scmp.eq.s32.totalorder %s25, 0
      %p73 = por %p71, %p72
      %s75 = sadd.s32 %s74, 1
      %p78 = scmp.eq.s32.totalorder %s19, 1
      %p79 = scmp.ne.s32.totalorder %s74, %s76
      %p80 = scmp.eq.s32.totalorder %s19, 0
      %p81 = por %p79, %p80
      %p82 = scmp.ne.s32.totalorder %s74, %s76
      %p83 = scmp.eq.s32.totalorder %s24, 1
      %p84 = por %p82, %p83
      %p85 = scmp.ne.s32.totalorder %s76, %s77
      %p86 = scmp.eq.s32.totalorder %s24, 0
      %p87 = por %p85, %p86
      %p88 = scmp.ne.s32.totalorder %s76, %s77
      %p89 = scmp.eq.s32.totalorder %s25, 1
      %p90 = por %p88, %p89
      %p92 = scmp.ne.s32.totalorder %s77, %s91
      %p93 = scmp.eq.s32.totalorder %s25, 0
      %p94 = por %p92, %p93
      %s96 = sadd.s32 %s95, 1
      %p99 = scmp.eq.s32.totalorder %s19, 1
      %p100 = scmp.ne.s32.totalorder %s95, %s97
      %p101 = scmp.eq.s32.totalorder %s19, 0
      %p102 = por %p100, %p101
      %p103 = scmp.ne.s32.totalorder %s95, %s97
      %p104 = scmp.eq.s32.totalorder %s24, 1
      %p105 = por %p103, %p104
      %p106 = scmp.ne.s32.totalorder %s97, %s98
      %p107 = scmp.eq.s32.totalorder %s24, 0
      %p108 = por %p106, %p107
      %p109 = scmp.ne.s32.totalorder %s97, %s98
      %p110 = scmp.eq.s32.totalorder %s25, 1
      %p111 = por %p109, %p110
      %p113 = scmp.ne.s32.totalorder %s98, %s112
      %p114 = scmp.eq.s32.totalorder %s25, 0
      %p115 = por %p113, %p114
      %s117 = sadd.s32 %s116, 1
      %p120 = scmp.eq.s32.totalorder %s19, 1
      %p121 = scmp.ne.s32.totalorder %s116, %s118
      %p122 = scmp.eq.s32.totalorder %s19, 0
      %p123 = por %p121, %p122
      %p124 = scmp.ne.s32.totalorder %s116, %s118
      %p125 = scmp.eq.s32.totalorder %s24, 1
      %p126 = por %p124, %p125
      %p127 = scmp.ne.s32.totalorder %s118, %s119
      %p128 = scmp.eq.s32.totalorder %s24, 0
      %p129 = por %p127, %p128
      %p130 = scmp.ne.s32.totalorder %s118, %s119
      %p131 = scmp.eq.s32.totalorder %s25, 1
      %p132 = por %p130, %p131
      %p134 = scmp.ne.s32.totalorder %s119, %s133
      %p135 = scmp.eq.s32.totalorder %s25, 0
      %p136 = por %p134, %p135
      %s138 = sadd.s32 %s137, 1
      %p141 = scmp.eq.s32.totalorder %s19, 1
      %p142 = scmp.ne.s32.totalorder %s137, %s139
      %p143 = scmp.eq.s32.totalorder %s19, 0
      %p144 = por %p142, %p143
      %p145 = scmp.ne.s32.totalorder %s137, %s139
      %p146 = scmp.eq.s32.totalorder %s24, 1
      %p147 = por %p145, %p146
      %p148 = scmp.ne.s32.totalorder %s139, %s140
      %p149 = scmp.eq.s32.totalorder %s24, 0
      %p150 = por %p148, %p149
      %p151 = scmp.ne.s32.totalorder %s139, %s140
      %p152 = scmp.eq.s32.totalorder %s25, 1
      %p153 = por %p151, %p152
      %p155 = scmp.ne.s32.totalorder %s140, %s154
      %p156 = scmp.eq.s32.totalorder %s25, 0
      %p157 = por %p155, %p156
      %s158 = ssub.s32 %s19, %s26
      %p159 = scmp.eq.s32.totalorder %s158, 0
      %s161 = sadd.s32 %s160, 1
      %s162 = scalar_select %p159, %s160, %s161
      %p165 = pneg %p159
      %p166 = scmp.eq.s32.totalorder %s19, 1
      %p167 = por %p165, %p166
      %p168 = scmp.ne.s32.totalorder %s160, %s163
      %p169 = scmp.eq.s32.totalorder %s19, 0
      %p170 = por %p168, %p169
      %p171 = scmp.ne.s32.totalorder %s160, %s163
      %p172 = scmp.eq.s32.totalorder %s24, 1
      %p173 = por %p171, %p172
      %p174 = scmp.ne.s32.totalorder %s163, %s164
      %p175 = scmp.eq.s32.totalorder %s24, 0
      %p176 = por %p174, %p175
      %p177 = scmp.ne.s32.totalorder %s163, %s164
      %p178 = scmp.eq.s32.totalorder %s25, 1
      %p179 = por %p177, %p178
      %p181 = scmp.ne.s32.totalorder %s164, %s180
      %p182 = scmp.eq.s32.totalorder %s25, 0
      %p183 = por %p181, %p182
      %p184 = scmp.le.s32.totalorder 1, %s19
      %p185 = scmp.lt.s32.totalorder %s19, 3
      %p186 = pnand %p184, %p185
      %p187 = pneg %p186
      // Predicated region
      $region9: #{tpu_custom_call.1} parent=5 // pred_check
        _
      $region10: #{tpu_custom_call.1} parent=5 // pred_check_branch
        %189 = sbr.rel (%p186) target = $region12
      $region11: #{tpu_custom_call.1} parent=5 // pred_region
        %s190 = ssub.s32 %s19, 1
        // Predicated region
        $region13: #{tpu_custom_call.1} parent=11 // pred_check
          %p191 = pneg %p66
        $region14: #{tpu_custom_call.1} parent=11 // pred_check_branch
          %193 = sbr.rel (%p191) target = $region16
        $region15: #{tpu_custom_call.1} parent=11 // pred_region
          _
        $region16: #{tpu_custom_call.1} parent=11 // pred_fallthru
          _
        // Predicated region
        $region17: #{tpu_custom_call.1} parent=11 // pred_check
          %p194 = pneg %p87
        $region18: #{tpu_custom_call.1} parent=11 // pred_check_branch
          %196 = sbr.rel (%p194) target = $region20
        $region19: #{tpu_custom_call.1} parent=11 // pred_region
          _
        $region20: #{tpu_custom_call.1} parent=11 // pred_fallthru
          _
        // Predicated region
        $region21: #{tpu_custom_call.1} parent=11 // pred_check
          %p197 = pneg %p108
        $region22: #{tpu_custom_call.1} parent=11 // pred_check_branch
          %199 = sbr.rel (%p197) target = $region24
        $region23: #{tpu_custom_call.1} parent=11 // pred_region
          %s201 = ssub.s32 512, 512
          %202 = vsyncadd [#allocation8], %s201
          %s203 = sshll.u32 [#allocation7], 4
          %s204 = int_to_ptr.vmem [resolvable:$true] %s203
          %209 = dma.hbm_to_vmem [thread:$0]  %s3, 512, %s204, [#allocation8], 128, 128, 8
        $region24: #{tpu_custom_call.1} parent=11 // pred_fallthru
          _
        // Predicated region
        $region25: #{tpu_custom_call.1} parent=11 // pred_check
          %p210 = pneg %p129
        $region26: #{tpu_custom_call.1} parent=11 // pred_check_branch
          %212 = sbr.rel (%p210) target = $region28
        $region27: #{tpu_custom_call.1} parent=11 // pred_region
          %s214 = ssub.s32 512, 512
          %215 = vsyncadd [#allocation8], %s214
          %s216 = sshll.u32 [#allocation9], 4
          %s217 = int_to_ptr.vmem [resolvable:$true] %s216
          %222 = dma.hbm_to_vmem [thread:$0]  %s4, 512, %s217, [#allocation8], 128, 128, 8
        $region28: #{tpu_custom_call.1} parent=11 // pred_fallthru
          _
        // Predicated region
        $region29: #{tpu_custom_call.1} parent=11 // pred_check
          %p223 = pneg %p150
        $region30: #{tpu_custom_call.1} parent=11 // pred_check_branch
          %225 = sbr.rel (%p223) target = $region32
        $region31: #{tpu_custom_call.1} parent=11 // pred_region
          _
        $region32: #{tpu_custom_call.1} parent=11 // pred_fallthru
          _
      $region12: #{tpu_custom_call.1} parent=5 // pred_fallthru
        _
      %p226 = scmp.lt.s32.totalorder %s19, 2
      // Predicated region
      $region33: #{tpu_custom_call.1} parent=5 // pred_check
        %p227 = pneg %p226
      $region34: #{tpu_custom_call.1} parent=5 // pred_check_branch
        %229 = sbr.rel (%p227) target = $region36
      $region35: #{tpu_custom_call.1} parent=5 // pred_region
        // Predicated region
        $region37: #{tpu_custom_call.1} parent=35 // pred_check
          %p230 = pneg %p39
        $region38: #{tpu_custom_call.1} parent=35 // pred_check_branch
          %232 = sbr.rel (%p230) target = $region40
        $region39: #{tpu_custom_call.1} parent=35 // pred_region
          %s233 = sand.u32 %s29, 1
          %s234 = scalar_lea.sflag [#allocation5], %s233
          %s235 = sand.u32 %s29, 1
          %s236 = smul.addr %s235, 8
          %s237 = scalar_lea.vmem [#allocation4], %s236
          %s239 = ssub.s32 128, 128
          %240 = vsyncadd %s234, %s239
          %s241 = smul.addr %s19, 128
          %s242 = scalar_lea.hbm %s0, %s241
          %s244 = sshll.u32 %s237, 4
          %s245 = int_to_ptr.vmem [resolvable:$true] %s244
          %247 = dma.hbm_to_vmem [thread:$0]  %s242, 128, %s245, %s234
        $region40: #{tpu_custom_call.1} parent=35 // pred_fallthru
          _
      $region36: #{tpu_custom_call.1} parent=5 // pred_fallthru
        _
      %p248 = scmp.le.s32.totalorder 1, %s19
      %p249 = scmp.lt.s32.totalorder %s19, 3
      %p250 = pnand %p248, %p249
      %p251 = pneg %p250
      // Predicated region
      $region41: #{tpu_custom_call.1} parent=5 // pred_check
        _
      $region42: #{tpu_custom_call.1} parent=5 // pred_check_branch
        %253 = sbr.rel (%p250) target = $region44
      $region43: #{tpu_custom_call.1} parent=5 // pred_region
        %s254 = ssub.s32 %s19, 1
        %s255 = sand.u32 %s32, 1
        %s256 = scalar_lea.sflag [#allocation5], %s255
        %s257 = sand.u32 %s32, 1
        %s258 = smul.addr %s257, 8
        %s259 = scalar_lea.vmem [#allocation4], %s258
        // Predicated region
        $region45: #{tpu_custom_call.1} parent=43 // pred_check
          %p260 = pneg %p45
        $region46: #{tpu_custom_call.1} parent=43 // pred_check_branch
          %262 = sbr.rel (%p260) target = $region48
        $region47: #{tpu_custom_call.1} parent=43 // pred_region
          %263 = dma.done %s256, 128
        $region48: #{tpu_custom_call.1} parent=43 // pred_fallthru
          _
        // Predicated region
        $region49: #{tpu_custom_call.1} parent=43 // pred_check
          %p264 = pneg %p108
        $region50: #{tpu_custom_call.1} parent=43 // pred_check_branch
          %266 = sbr.rel (%p264) target = $region52
        $region51: #{tpu_custom_call.1} parent=43 // pred_region
          %267 = dma.done [#allocation8], 512
        $region52: #{tpu_custom_call.1} parent=43 // pred_fallthru
          _
        // Predicated region
        $region53: #{tpu_custom_call.1} parent=43 // pred_check
          %p268 = pneg %p129
        $region54: #{tpu_custom_call.1} parent=43 // pred_check_branch
          %270 = sbr.rel (%p268) target = $region56
        $region55: #{tpu_custom_call.1} parent=43 // pred_region
          %271 = dma.done [#allocation8], 512
        $region56: #{tpu_custom_call.1} parent=43 // pred_fallthru
          _
        %s272 = sand.u32 %s32, 1
        %s273 = scalar_lea.sflag [#allocation5], %s272
        %s274 = sand.u32 %s32, 1
        %s275 = smul.addr %s274, 8
        %s276 = scalar_lea.vmem [#allocation4], %s275
        %p277 = pneg %p45
        %p278 = pneg %p42
        %p279 = pneg %p66
        %p280 = pneg %p63
        %p281 = pneg %p87
        %p282 = pneg %p84
        %p283 = pneg %p108
        %p284 = pneg %p105
        %p285 = pneg %p129
        %p286 = pneg %p126
        %p287 = pneg %p150
        %p288 = pneg %p147
        %p289 = pneg %p176
        %p290 = pneg %p173
        %s291 = sand.u32 %s163, 1
        %s292 = scalar_lea.sflag [#allocation6], %s291
        %s293 = sand.u32 %s163, 1
        %s294 = smul.addr %s293, 8
        %s295 = scalar_lea.vmem [#allocation10], %s294
        %v296 = vld [vmem:[%s259] sm:$0xff]
        %vm297 = vcmask 261120
        %v298 = vsel %vm297, %v296, 0.0
        %299 = vadd.xlane.f32.xlu0 %v298
        %v300 = vpop.xlane.xlu0 %299
        %v301 = vrcp.pop 32.0
        %v302 = vmul.f32 %v300, %v301
        %v303 = vsub.f32 %v296, %v302
        %v304 = vmul.f32 %v303, %v303
        %v305 = vsel %vm297, %v304, 0.0
        %306 = vadd.xlane.f32.xlu0 %v305
        %v307 = vpop.xlane.xlu0 %306
        %v308 = vmul.f32 %v307, %v301
        %v309 = vadd.f32 %v308, 1e-05
        %v310 = vrsqrt.pop %v309
        %v311 = vmul.f32 %v303, %v310
        %v312 = vld [vmem:[%s1] sm:$0x1]
        %v314 = vlaneseq
        %v315 = vshrl.u32 %v314, 7
        %v316 = vsub.s32 0, %v315
        %v317 = vrot.slane %v312, %v316
        %v319 = vmul.f32 %v311, %v317
        %v320 = vld [vmem:[%s2] sm:$0x1]
        %v322 = vlaneseq
        %v323 = vshrl.u32 %v322, 7
        %v324 = vsub.s32 0, %v323
        %v325 = vrot.slane %v320, %v324
        %v327 = vadd.f32 %v319, %v325
        %v328 = vld [vmem:[#allocation7] sm:$0xff]
        %v329 = vld [vmem:[#allocation7 + $0x8] sm:$0xff]
        %v330 = vld [vmem:[#allocation7 + $0x10] sm:$0xff]
        %v331 = vld [vmem:[#allocation7 + $0x18] sm:$0xff]
        %v333 = vsel %vm297, %v327, 0
        %335 = vmatprep.subr.mxu0 0.0
        %336 = vmatpush1.msra.mxu0 0.0
        %337 = vmatprep.subr.mxu0 0.0
        %338 = vmatpush1.msra.mxu0 0.0
        %339 = vmatprep.subr.mxu0 0.0
        %340 = vmatpush1.msra.mxu0 0.0
        %341 = vmatprep.subr.mxu0 0.0
        %342 = vmatpush1.msra.mxu0 0.0
        %343 = vmatprep.subr.mxu0 0.0
        %344 = vmatpush1.msra.mxu0 0.0
        %345 = vmatprep.subr.mxu0 0.0
        %346 = vmatpush1.msra.mxu0 0.0
        %347 = vmatprep.subr.mxu0 0.0
        %348 = vmatpush1.msra.mxu0 0.0
        %349 = vmatprep.subr.mxu0 0.0
        %350 = vmatpush1.msra.mxu0 0.0
        %351 = vmatprep.subr.mxu0 0.0
        %352 = vmatpush1.msra.mxu0 0.0
        %353 = vmatprep.subr.mxu0 0.0
        %354 = vmatpush1.msra.mxu0 0.0
        %355 = vmatprep.subr.mxu0 0.0
        %356 = vmatpush1.msra.mxu0 0.0
        %357 = vmatprep.subr.mxu0 0.0
        %358 = vmatpush1.msra.mxu0 0.0
        %359 = vmatprep.subr.mxu0 0.0
        %360 = vmatpush1.msra.mxu0 %v331
        %361 = vmatprep.subr.mxu0 0.0
        %362 = vmatpush1.msra.mxu0 %v330
        %363 = vmatprep.subr.mxu0 0.0
        %364 = vmatpush1.msra.mxu0 %v329
        %365 = vmatprep.subr.mxu0 0.0
        %366 = vmatpush1.msra.mxu0 %v328
        %367 = vmatprep.subr.mxu0 0.0
        %368 = vmatpush2.msra.mxu0 0.0
        %369 = vmatprep.subr.mxu0 0.0
        %370 = vmatpush2.msra.mxu0 0.0
        %371 = vmatprep.subr.mxu0 0.0
        %372 = vmatpush2.msra.mxu0 0.0
        %373 = vmatprep.subr.mxu0 0.0
        %374 = vmatpush2.msra.mxu0 0.0
        %375 = vmatprep.subr.mxu0 0.0
        %376 = vmatpush2.msra.mxu0 0.0
        %377 = vmatprep.subr.mxu0 0.0
        %378 = vmatpush2.msra.mxu0 0.0
        %379 = vmatprep.subr.mxu0 0.0
        %380 = vmatpush2.msra.mxu0 0.0
        %381 = vmatprep.subr.mxu0 0.0
        %382 = vmatpush2.msra.mxu0 0.0
        %383 = vmatprep.subr.mxu0 0.0
        %384 = vmatpush2.msra.mxu0 0.0
        %385 = vmatprep.subr.mxu0 0.0
        %386 = vmatpush2.msra.mxu0 0.0
        %387 = vmatprep.subr.mxu0 0.0
        %388 = vmatpush2.msra.mxu0 0.0
        %389 = vmatprep.subr.mxu0 0.0
        %390 = vmatpush2.msra.mxu0 0.0
        %391 = vmatprep.subr.mxu0 0.0
        %392 = vmatpush2.msra.mxu0 0.0
        %393 = vmatprep.subr.mxu0 0.0
        %394 = vmatpush2.msra.mxu0 0.0
        %395 = vmatprep.subr.mxu0 0.0
        %396 = vmatpush2.msra.mxu0 0.0
        %397 = vmatprep.subr.mxu0 0.0
        %398 = vmatpush2.msra.mxu0 0.0
        %399 = vmatprep.mubr.f32.mxu0 0.0
        %400 = vmatmul.mubr.f32.gmra.mxu0 %v333
        %v401 = vpop.f32.mrf.mxu0
        %v402 = vadd.f32 0.0, %v401
        %v403 = vpop.f32.mrf.mxu0
        %404 = vdwg.mxu0
        %vm405 = vcmask 785408
        %406 = vst.msk [vmem:[#allocation2] sm:$0xff] %vm405, %v402
        %v407 = vld [vmem:[#allocation2] sm:$0xff]
        %409 = vrot.lane.b32.xlu0 %v407, 96
        %v410 = vpop.permute.xlu0 %409
        %vm411 = vcmask 130048
        %v412 = vsel %vm411, %v407, 0
        %v414 = vsel %vm411, %v410, 0
        %416 = vmatprep.subr.mxu0 0.0
        %417 = vmatpush1.xpose.msra.mxu0 0.0
        %418 = vmatprep.subr.mxu0 0.0
        %419 = vmatpush1.xpose.msra.mxu0 0.0
        %420 = vmatprep.subr.mxu0 0.0
        %421 = vmatpush1.xpose.msra.mxu0 0.0
        %422 = vmatprep.subr.mxu0 0.0
        %423 = vmatpush1.xpose.msra.mxu0 0.0
        %424 = vmatprep.subr.mxu0 0.0
        %425 = vmatpush1.xpose.msra.mxu0 0.0
        %426 = vmatprep.subr.mxu0 0.0
        %427 = vmatpush1.xpose.msra.mxu0 0.0
        %428 = vmatprep.subr.mxu0 0.0
        %429 = vmatpush1.xpose.msra.mxu0 0.0
        %430 = vmatprep.subr.mxu0 0.0
        %431 = vmatpush1.xpose.msra.mxu0 0.0
        %432 = vmatprep.subr.mxu0 0.0
        %433 = vmatpush1.xpose.msra.mxu0 0.0
        %434 = vmatprep.subr.mxu0 0.0
        %435 = vmatpush1.xpose.msra.mxu0 0.0
        %436 = vmatprep.subr.mxu0 0.0
        %437 = vmatpush1.xpose.msra.mxu0 0.0
        %438 = vmatprep.subr.mxu0 0.0
        %439 = vmatpush1.xpose.msra.mxu0 0.0
        %440 = vmatprep.subr.mxu0 0.0
        %441 = vmatpush1.xpose.msra.mxu0 0.0
        %442 = vmatprep.subr.mxu0 0.0
        %443 = vmatpush1.xpose.msra.mxu0 0.0
        %444 = vmatprep.subr.mxu0 0.0
        %445 = vmatpush1.xpose.msra.mxu0 0.0
        %446 = vmatprep.subr.mxu0 0.0
        %447 = vmatpush1.xpose.msra.mxu0 %v414
        %448 = vmatprep.subr.mxu0 0.0
        %449 = vmatpush2.xpose.msra.mxu0 0.0
        %450 = vmatprep.subr.mxu0 0.0
        %451 = vmatpush2.xpose.msra.mxu0 0.0
        %452 = vmatprep.subr.mxu0 0.0
        %453 = vmatpush2.xpose.msra.mxu0 0.0
        %454 = vmatprep.subr.mxu0 0.0
        %455 = vmatpush2.xpose.msra.mxu0 0.0
        %456 = vmatprep.subr.mxu0 0.0
        %457 = vmatpush2.xpose.msra.mxu0 0.0
        %458 = vmatprep.subr.mxu0 0.0
        %459 = vmatpush2.xpose.msra.mxu0 0.0
        %460 = vmatprep.subr.mxu0 0.0
        %461 = vmatpush2.xpose.msra.mxu0 0.0
        %462 = vmatprep.subr.mxu0 0.0
        %463 = vmatpush2.xpose.msra.mxu0 0.0
        %464 = vmatprep.subr.mxu0 0.0
        %465 = vmatpush2.xpose.msra.mxu0 0.0
        %466 = vmatprep.subr.mxu0 0.0
        %467 = vmatpush2.xpose.msra.mxu0 0.0
        %468 = vmatprep.subr.mxu0 0.0
        %469 = vmatpush2.xpose.msra.mxu0 0.0
        %470 = vmatprep.subr.mxu0 0.0
        %471 = vmatpush2.xpose.msra.mxu0 0.0
        %472 = vmatprep.subr.mxu0 0.0
        %473 = vmatpush2.xpose.msra.mxu0 0.0
        %474 = vmatprep.subr.mxu0 0.0
        %475 = vmatpush2.xpose.msra.mxu0 0.0
        %476 = vmatprep.subr.mxu0 0.0
        %477 = vmatpush2.xpose.msra.mxu0 0.0
        %478 = vmatprep.subr.mxu0 0.0
        %479 = vmatpush2.xpose.msra.mxu0 0.0
        %480 = vmatprep.mubr.f32.mxu0 0.0
        %481 = vmatmul.mubr.f32.gmra.mxu0 %v412
        %v482 = vpop.f32.mrf.mxu0
        %v483 = vadd.f32 0.0, %v482
        %v484 = vpop.f32.mrf.mxu0
        %485 = vdwg.mxu0
        %vm486 = vcmask 64512
        %v487 = vsel %vm486, %v483, -inf
        %488 = vmax.xlane.f32.xlu0 %v487
        %v489 = vpop.xlane.xlu0 %488
        %v490 = vsub.f32 %v483, %v489
        %v491 = vmul.f32 %v490, 1.442695
        %v492 = vpow.pop %v491
        %v493 = vsel %vm486, %v492, 0.0
        %494 = vadd.xlane.f32.xlu0 %v493
        %v495 = vpop.xlane.xlu0 %494
        %496 = vrot.lane.b32.xlu0 %v407, 64
        %v497 = vpop.permute.xlu0 %496
        %v500 = vsel %vm486, %v492, 0
        %502 = vmatprep.subr.mxu0 0.0
        %503 = vmatpush1.msra.mxu0 0.0
        %504 = vmatprep.subr.mxu0 0.0
        %505 = vmatpush1.msra.mxu0 0.0
        %506 = vmatprep.subr.mxu0 0.0
        %507 = vmatpush1.msra.mxu0 0.0
        %508 = vmatprep.subr.mxu0 0.0
        %509 = vmatpush1.msra.mxu0 0.0
        %510 = vmatprep.subr.mxu0 0.0
        %511 = vmatpush1.msra.mxu0 0.0
        %512 = vmatprep.subr.mxu0 0.0
        %513 = vmatpush1.msra.mxu0 0.0
        %514 = vmatprep.subr.mxu0 0.0
        %515 = vmatpush1.msra.mxu0 0.0
        %516 = vmatprep.subr.mxu0 0.0
        %517 = vmatpush1.msra.mxu0 0.0
        %518 = vmatprep.subr.mxu0 0.0
        %519 = vmatpush1.msra.mxu0 0.0
        %520 = vmatprep.subr.mxu0 0.0
        %521 = vmatpush1.msra.mxu0 0.0
        %522 = vmatprep.subr.mxu0 0.0
        %523 = vmatpush1.msra.mxu0 0.0
        %524 = vmatprep.subr.mxu0 0.0
        %525 = vmatpush1.msra.mxu0 0.0
        %526 = vmatprep.subr.mxu0 0.0
        %527 = vmatpush1.msra.mxu0 0.0
        %528 = vmatprep.subr.mxu0 0.0
        %529 = vmatpush1.msra.mxu0 0.0
        %530 = vmatprep.subr.mxu0 0.0
        %531 = vmatpush1.msra.mxu0 0.0
        %532 = vmatprep.subr.mxu0 0.0
        %533 = vmatpush1.msra.mxu0 %v497
        %534 = vmatprep.subr.mxu0 0.0
        %535 = vmatpush2.msra.mxu0 0.0
        %536 = vmatprep.subr.mxu0 0.0
        %537 = vmatpush2.msra.mxu0 0.0
        %538 = vmatprep.subr.mxu0 0.0
        %539 = vmatpush2.msra.mxu0 0.0
        %540 = vmatprep.subr.mxu0 0.0
        %541 = vmatpush2.msra.mxu0 0.0
        %542 = vmatprep.subr.mxu0 0.0
        %543 = vmatpush2.msra.mxu0 0.0
        %544 = vmatprep.subr.mxu0 0.0
        %545 = vmatpush2.msra.mxu0 0.0
        %546 = vmatprep.subr.mxu0 0.0
        %547 = vmatpush2.msra.mxu0 0.0
        %548 = vmatprep.subr.mxu0 0.0
        %549 = vmatpush2.msra.mxu0 0.0
        %550 = vmatprep.subr.mxu0 0.0
        %551 = vmatpush2.msra.mxu0 0.0
        %552 = vmatprep.subr.mxu0 0.0
        %553 = vmatpush2.msra.mxu0 0.0
        %554 = vmatprep.subr.mxu0 0.0
        %555 = vmatpush2.msra.mxu0 0.0
        %556 = vmatprep.subr.mxu0 0.0
        %557 = vmatpush2.msra.mxu0 0.0
        %558 = vmatprep.subr.mxu0 0.0
        %559 = vmatpush2.msra.mxu0 0.0
        %560 = vmatprep.subr.mxu0 0.0
        %561 = vmatpush2.msra.mxu0 0.0
        %562 = vmatprep.subr.mxu0 0.0
        %563 = vmatpush2.msra.mxu0 0.0
        %564 = vmatprep.subr.mxu0 0.0
        %565 = vmatpush2.msra.mxu0 0.0
        %566 = vmatprep.mubr.f32.mxu0 0.0
        %567 = vmatmul.mubr.f32.gmra.mxu0 %v500
        %v568 = vpop.f32.mrf.mxu0
        %v569 = vadd.f32 0.0, %v568
        %v570 = vpop.f32.mrf.mxu0
        %571 = vdwg.mxu0
        %v572 = vrcp.pop %v495
        %v573 = vmul.f32 %v569, %v572
        %574 = vst.msk [vmem:[#allocation3] sm:$0xff] %vm411, %v573
        %v575 = vld [vmem:[#allocation2] sm:$0xff]
        %577 = vrot.lane.b32.xlu0 %v575, 112
        %v578 = vpop.permute.xlu0 %577
        %579 = vrot.lane.b32.xlu0 %v575, 80
        %v580 = vpop.permute.xlu0 %579
        %v581 = vsel %vm411, %v578, 0
        %v583 = vsel %vm411, %v580, 0
        %585 = vmatprep.subr.mxu0 0.0
        %586 = vmatpush1.xpose.msra.mxu0 0.0
        %587 = vmatprep.subr.mxu0 0.0
        %588 = vmatpush1.xpose.msra.mxu0 0.0
        %589 = vmatprep.subr.mxu0 0.0
        %590 = vmatpush1.xpose.msra.mxu0 0.0
        %591 = vmatprep.subr.mxu0 0.0
        %592 = vmatpush1.xpose.msra.mxu0 0.0
        %593 = vmatprep.subr.mxu0 0.0
        %594 = vmatpush1.xpose.msra.mxu0 0.0
        %595 = vmatprep.subr.mxu0 0.0
        %596 = vmatpush1.xpose.msra.mxu0 0.0
        %597 = vmatprep.subr.mxu0 0.0
        %598 = vmatpush1.xpose.msra.mxu0 0.0
        %599 = vmatprep.subr.mxu0 0.0
        %600 = vmatpush1.xpose.msra.mxu0 0.0
        %601 = vmatprep.subr.mxu0 0.0
        %602 = vmatpush1.xpose.msra.mxu0 0.0
        %603 = vmatprep.subr.mxu0 0.0
        %604 = vmatpush1.xpose.msra.mxu0 0.0
        %605 = vmatprep.subr.mxu0 0.0
        %606 = vmatpush1.xpose.msra.mxu0 0.0
        %607 = vmatprep.subr.mxu0 0.0
        %608 = vmatpush1.xpose.msra.mxu0 0.0
        %609 = vmatprep.subr.mxu0 0.0
        %610 = vmatpush1.xpose.msra.mxu0 0.0
        %611 = vmatprep.subr.mxu0 0.0
        %612 = vmatpush1.xpose.msra.mxu0 0.0
        %613 = vmatprep.subr.mxu0 0.0
        %614 = vmatpush1.xpose.msra.mxu0 0.0
        %615 = vmatprep.subr.mxu0 0.0
        %616 = vmatpush1.xpose.msra.mxu0 %v583
        %617 = vmatprep.subr.mxu0 0.0
        %618 = vmatpush2.xpose.msra.mxu0 0.0
        %619 = vmatprep.subr.mxu0 0.0
        %620 = vmatpush2.xpose.msra.mxu0 0.0
        %621 = vmatprep.subr.mxu0 0.0
        %622 = vmatpush2.xpose.msra.mxu0 0.0
        %623 = vmatprep.subr.mxu0 0.0
        %624 = vmatpush2.xpose.msra.mxu0 0.0
        %625 = vmatprep.subr.mxu0 0.0
        %626 = vmatpush2.xpose.msra.mxu0 0.0
        %627 = vmatprep.subr.mxu0 0.0
        %628 = vmatpush2.xpose.msra.mxu0 0.0
        %629 = vmatprep.subr.mxu0 0.0
        %630 = vmatpush2.xpose.msra.mxu0 0.0
        %631 = vmatprep.subr.mxu0 0.0
        %632 = vmatpush2.xpose.msra.mxu0 0.0
        %633 = vmatprep.subr.mxu0 0.0
        %634 = vmatpush2.xpose.msra.mxu0 0.0
        %635 = vmatprep.subr.mxu0 0.0
        %636 = vmatpush2.xpose.msra.mxu0 0.0
        %637 = vmatprep.subr.mxu0 0.0
        %638 = vmatpush2.xpose.msra.mxu0 0.0
        %639 = vmatprep.subr.mxu0 0.0
        %640 = vmatpush2.xpose.msra.mxu0 0.0
        %641 = vmatprep.subr.mxu0 0.0
        %642 = vmatpush2.xpose.msra.mxu0 0.0
        %643 = vmatprep.subr.mxu0 0.0
        %644 = vmatpush2.xpose.msra.mxu0 0.0
        %645 = vmatprep.subr.mxu0 0.0
        %646 = vmatpush2.xpose.msra.mxu0 0.0
        %647 = vmatprep.subr.mxu0 0.0
        %648 = vmatpush2.xpose.msra.mxu0 0.0
        %649 = vmatprep.mubr.f32.mxu0 0.0
        %650 = vmatmul.mubr.f32.gmra.mxu0 %v581
        %v651 = vpop.f32.mrf.mxu0
        %v652 = vadd.f32 0.0, %v651
        %v653 = vpop.f32.mrf.mxu0
        %654 = vdwg.mxu0
        %v655 = vsel %vm486, %v652, -inf
        %656 = vmax.xlane.f32.xlu0 %v655
        %v657 = vpop.xlane.xlu0 %656
        %v658 = vsub.f32 %v652, %v657
        %v659 = vmul.f32 %v658, 1.442695
        %v660 = vpow.pop %v659
        %v661 = vsel %vm486, %v660, 0.0
        %662 = vadd.xlane.f32.xlu0 %v661
        %v663 = vpop.xlane.xlu0 %662
        %664 = vrot.lane.b32.xlu0 %v575, 48
        %v665 = vpop.permute.xlu0 %664
        %v668 = vsel %vm486, %v660, 0
        %670 = vmatprep.subr.mxu0 0.0
        %671 = vmatpush1.msra.mxu0 0.0
        %672 = vmatprep.subr.mxu0 0.0
        %673 = vmatpush1.msra.mxu0 0.0
        %674 = vmatprep.subr.mxu0 0.0
        %675 = vmatpush1.msra.mxu0 0.0
        %676 = vmatprep.subr.mxu0 0.0
        %677 = vmatpush1.msra.mxu0 0.0
        %678 = vmatprep.subr.mxu0 0.0
        %679 = vmatpush1.msra.mxu0 0.0
        %680 = vmatprep.subr.mxu0 0.0
        %681 = vmatpush1.msra.mxu0 0.0
        %682 = vmatprep.subr.mxu0 0.0
        %683 = vmatpush1.msra.mxu0 0.0
        %684 = vmatprep.subr.mxu0 0.0
        %685 = vmatpush1.msra.mxu0 0.0
        %686 = vmatprep.subr.mxu0 0.0
        %687 = vmatpush1.msra.mxu0 0.0
        %688 = vmatprep.subr.mxu0 0.0
        %689 = vmatpush1.msra.mxu0 0.0
        %690 = vmatprep.subr.mxu0 0.0
        %691 = vmatpush1.msra.mxu0 0.0
        %692 = vmatprep.subr.mxu0 0.0
        %693 = vmatpush1.msra.mxu0 0.0
        %694 = vmatprep.subr.mxu0 0.0
        %695 = vmatpush1.msra.mxu0 0.0
        %696 = vmatprep.subr.mxu0 0.0
        %697 = vmatpush1.msra.mxu0 0.0
        %698 = vmatprep.subr.mxu0 0.0
        %699 = vmatpush1.msra.mxu0 0.0
        %700 = vmatprep.subr.mxu0 0.0
        %701 = vmatpush1.msra.mxu0 %v665
        %702 = vmatprep.subr.mxu0 0.0
        %703 = vmatpush2.msra.mxu0 0.0
        %704 = vmatprep.subr.mxu0 0.0
        %705 = vmatpush2.msra.mxu0 0.0
        %706 = vmatprep.subr.mxu0 0.0
        %707 = vmatpush2.msra.mxu0 0.0
        %708 = vmatprep.subr.mxu0 0.0
        %709 = vmatpush2.msra.mxu0 0.0
        %710 = vmatprep.subr.mxu0 0.0
        %711 = vmatpush2.msra.mxu0 0.0
        %712 = vmatprep.subr.mxu0 0.0
        %713 = vmatpush2.msra.mxu0 0.0
        %714 = vmatprep.subr.mxu0 0.0
        %715 = vmatpush2.msra.mxu0 0.0
        %716 = vmatprep.subr.mxu0 0.0
        %717 = vmatpush2.msra.mxu0 0.0
        %718 = vmatprep.subr.mxu0 0.0
        %719 = vmatpush2.msra.mxu0 0.0
        %720 = vmatprep.subr.mxu0 0.0
        %721 = vmatpush2.msra.mxu0 0.0
        %722 = vmatprep.subr.mxu0 0.0
        %723 = vmatpush2.msra.mxu0 0.0
        %724 = vmatprep.subr.mxu0 0.0
        %725 = vmatpush2.msra.mxu0 0.0
        %726 = vmatprep.subr.mxu0 0.0
        %727 = vmatpush2.msra.mxu0 0.0
        %728 = vmatprep.subr.mxu0 0.0
        %729 = vmatpush2.msra.mxu0 0.0
        %730 = vmatprep.subr.mxu0 0.0
        %731 = vmatpush2.msra.mxu0 0.0
        %732 = vmatprep.subr.mxu0 0.0
        %733 = vmatpush2.msra.mxu0 0.0
        %734 = vmatprep.mubr.f32.mxu0 0.0
        %735 = vmatmul.mubr.f32.gmra.mxu0 %v668
        %v736 = vpop.f32.mrf.mxu0
        %v737 = vadd.f32 0.0, %v736
        %v738 = vpop.f32.mrf.mxu0
        %739 = vdwg.mxu0
        %v740 = vrcp.pop %v663
        %v741 = vmul.f32 %v737, %v740
        %743 = vrot.lane.b32.xlu0 %v741, 16
        %v744 = vpop.permute.xlu0 %743
        %vm746 = vcmask 261248
        %747 = vst.msk [vmem:[#allocation3] sm:$0xff] %vm746, %v744
        %v748 = vld [vmem:[#allocation3] sm:$0xff]
        %v749 = vld [vmem:[#allocation9] sm:$0xff]
        %v750 = vld [vmem:[#allocation9 + $0x8] sm:$0xff]
        %v751 = vld [vmem:[#allocation9 + $0x10] sm:$0xff]
        %v752 = vld [vmem:[#allocation9 + $0x18] sm:$0xff]
        %v753 = vld [vmem:[%s5] sm:$0x1]
        %v755 = vlaneseq
        %v756 = vshrl.u32 %v755, 7
        %v757 = vsub.s32 0, %v756
        %v758 = vrot.slane %v753, %v757
        %v761 = vsel %vm297, %v748, 0
        %763 = vmatprep.subr.mxu0 0.0
        %764 = vmatpush1.msra.mxu0 0.0
        %765 = vmatprep.subr.mxu0 0.0
        %766 = vmatpush1.msra.mxu0 0.0
        %767 = vmatprep.subr.mxu0 0.0
        %768 = vmatpush1.msra.mxu0 0.0
        %769 = vmatprep.subr.mxu0 0.0
        %770 = vmatpush1.msra.mxu0 0.0
        %771 = vmatprep.subr.mxu0 0.0
        %772 = vmatpush1.msra.mxu0 0.0
        %773 = vmatprep.subr.mxu0 0.0
        %774 = vmatpush1.msra.mxu0 0.0
        %775 = vmatprep.subr.mxu0 0.0
        %776 = vmatpush1.msra.mxu0 0.0
        %777 = vmatprep.subr.mxu0 0.0
        %778 = vmatpush1.msra.mxu0 0.0
        %779 = vmatprep.subr.mxu0 0.0
        %780 = vmatpush1.msra.mxu0 0.0
        %781 = vmatprep.subr.mxu0 0.0
        %782 = vmatpush1.msra.mxu0 0.0
        %783 = vmatprep.subr.mxu0 0.0
        %784 = vmatpush1.msra.mxu0 0.0
        %785 = vmatprep.subr.mxu0 0.0
        %786 = vmatpush1.msra.mxu0 0.0
        %787 = vmatprep.subr.mxu0 0.0
        %788 = vmatpush1.msra.mxu0 %v752
        %789 = vmatprep.subr.mxu0 0.0
        %790 = vmatpush1.msra.mxu0 %v751
        %791 = vmatprep.subr.mxu0 0.0
        %792 = vmatpush1.msra.mxu0 %v750
        %793 = vmatprep.subr.mxu0 0.0
        %794 = vmatpush1.msra.mxu0 %v749
        %795 = vmatprep.subr.mxu0 0.0
        %796 = vmatpush2.msra.mxu0 0.0
        %797 = vmatprep.subr.mxu0 0.0
        %798 = vmatpush2.msra.mxu0 0.0
        %799 = vmatprep.subr.mxu0 0.0
        %800 = vmatpush2.msra.mxu0 0.0
        %801 = vmatprep.subr.mxu0 0.0
        %802 = vmatpush2.msra.mxu0 0.0
        %803 = vmatprep.subr.mxu0 0.0
        %804 = vmatpush2.msra.mxu0 0.0
        %805 = vmatprep.subr.mxu0 0.0
        %806 = vmatpush2.msra.mxu0 0.0
        %807 = vmatprep.subr.mxu0 0.0
        %808 = vmatpush2.msra.mxu0 0.0
        %809 = vmatprep.subr.mxu0 0.0
        %810 = vmatpush2.msra.mxu0 0.0
        %811 = vmatprep.subr.mxu0 0.0
        %812 = vmatpush2.msra.mxu0 0.0
        %813 = vmatprep.subr.mxu0 0.0
        %814 = vmatpush2.msra.mxu0 0.0
        %815 = vmatprep.subr.mxu0 0.0
        %816 = vmatpush2.msra.mxu0 0.0
        %817 = vmatprep.subr.mxu0 0.0
        %818 = vmatpush2.msra.mxu0 0.0
        %819 = vmatprep.subr.mxu0 0.0
        %820 = vmatpush2.msra.mxu0 0.0
        %821 = vmatprep.subr.mxu0 0.0
        %822 = vmatpush2.msra.mxu0 0.0
        %823 = vmatprep.subr.mxu0 0.0
        %824 = vmatpush2.msra.mxu0 0.0
        %825 = vmatprep.subr.mxu0 0.0
        %826 = vmatpush2.msra.mxu0 0.0
        %827 = vmatprep.mubr.f32.mxu0 0.0
        %828 = vmatmul.mubr.f32.gmra.mxu0 %v761
        %v829 = vpop.f32.mrf.mxu0
        %v830 = vadd.f32 %v758, %v829
        %v831 = vpop.f32.mrf.mxu0
        %832 = vdwg.mxu0
        %833 = vst [vmem:[%s295] sm:$0xff] %v830
        %s834 = sand.u32 %s163, 1
        %s835 = scalar_lea.sflag [#allocation6], %s834
        %s836 = sand.u32 %s163, 1
        %s837 = smul.addr %s836, 8
        %s838 = scalar_lea.vmem [#allocation10], %s837
        // Predicated region
        $region57: #{tpu_custom_call.1} parent=43 // pred_check
          %p839 = pneg %p173
        $region58: #{tpu_custom_call.1} parent=43 // pred_check_branch
          %841 = sbr.rel (%p839) target = $region60
        $region59: #{tpu_custom_call.1} parent=43 // pred_region
          %s843 = ssub.s32 128, 128
          %844 = vsyncadd %s835, %s843
          %s845 = smul.addr %s24, 128
          %s846 = scalar_lea.hbm %s6, %s845
          %s848 = sshll.u32 %s838, 4
          %s849 = int_to_ptr.vmem [resolvable:$true] %s848
          %851 = dma.vmem_to_hbm [thread:$0]  %s849, 128, %s846, %s835
        $region60: #{tpu_custom_call.1} parent=43 // pred_fallthru
          _
      $region44: #{tpu_custom_call.1} parent=5 // pred_fallthru
        _
      %p852 = scmp.le.s32.totalorder 2, %s19
      // Predicated region
      $region61: #{tpu_custom_call.1} parent=5 // pred_check
        %p853 = pneg %p852
      $region62: #{tpu_custom_call.1} parent=5 // pred_check_branch
        %855 = sbr.rel (%p853) target = $region64
      $region63: #{tpu_custom_call.1} parent=5 // pred_region
        %s856 = ssub.s32 %s19, 2
        // Predicated region
        $region65: #{tpu_custom_call.1} parent=63 // pred_check
          %p857 = pneg %p179
        $region66: #{tpu_custom_call.1} parent=63 // pred_check_branch
          %859 = sbr.rel (%p857) target = $region68
        $region67: #{tpu_custom_call.1} parent=63 // pred_region
          %s860 = sand.u32 %s164, 1
          %s861 = scalar_lea.sflag [#allocation6], %s860
          %s862 = sand.u32 %s164, 1
          %s863 = smul.addr %s862, 8
          %s864 = scalar_lea.vmem [#allocation10], %s863
          %865 = dma.done %s861, 128
        $region68: #{tpu_custom_call.1} parent=63 // pred_fallthru
          _
      $region64: #{tpu_custom_call.1} parent=5 // pred_fallthru
        _
    $region6: #{tpu_custom_call.1} parent=1 // loop_footer
      %s23 = sadd.s32 1, %s19
    $region7: #{tpu_custom_call.1} parent=1 // loop_footer_branch
      %18 = sbr.rel target = $region3
    $region8: #{tpu_custom_call.1} parent=1 // loop_exit
      _
    %866 = vsyncpa [#allocation5], 1
    %s867 = scalar_lea.sflag [#allocation5], 1
    %868 = vsyncpa %s867, 1
    %869 = vsyncpa [#allocation8], 1
    %870 = vsyncpa [#allocation6], 1
    %s871 = scalar_lea.sflag [#allocation6], 1
    %872 = vsyncpa %s871, 1

</llo_original>
